<compile_context>
chip_gen: v6e
topology: v6e:2x2x1
jax: 0.10.0
libtpu: 0.0.40
codegen_flags: <defaults>
</compile_context>

<pallas_src>
import functools

import jax
import jax.numpy as jnp
from jax.experimental import pallas as pl
from jax.experimental.pallas import tpu as pltpu


def _lightconv_kernel(x_ref, w_ref, b_ref, o_ref, *scratch,
                      K, padding, L, T, T_out):
    # x_ref:  (1, C_TILE, T)       unpadded input tile (native dtype)
    # w_ref:  (C_TILE, K)          per-channel taps, f32
    # b_ref:  (C_TILE, 1)          per-channel bias, f32 (zeros if bias=False)
    # o_ref:  (1, C_TILE, T_out)   output tile
    # scratch (only when padding > 0): (C_TILE, L + T + padding) halo buffer in
    #   the input dtype, with x stored lane-aligned at offset L (L % 128 == 0).
    c_tile = o_ref.shape[1]

    # Bias folded into the accumulator init (no epilogue add).
    acc = jnp.broadcast_to(b_ref[...], (c_tile, T_out)).astype(jnp.float32)

    if padding == 0:
        # No scratch round-trip: every tap window lies inside [0, T).
        xv = x_ref[0]
        for k in range(K):
            acc = acc + xv[:, k:k + T_out] * w_ref[:, k:k + 1]
    else:
        xpad_ref, = scratch
        # Lane-aligned halo build: x goes to [L, L+T) with L a multiple of 128,
        # so the full-tile store is unrotated/unmasked (except the tail vreg);
        # zeros only in the small left/right halos.
        xpad_ref[:, L:L + T] = x_ref[0]
        xpad_ref[:, :L] = jnp.zeros((c_tile, L), xpad_ref.dtype)
        xpad_ref[:, L + T:] = jnp.zeros((c_tile, padding), xpad_ref.dtype)
        base = L - padding  # >= 0 since L = ceil(padding/128)*128
        # K is small & static: unrolled shift-and-MAC.  The per-tap lane shifts
        # go to the XLU slot; the bf16/f32 promotion happens in the multiply
        # with the f32 taps, accumulation stays f32.
        # (For large K on v7x a pltpu.roll-based shift could offload the XLU
        #  work explicitly; unnecessary at the small K this module uses.)
        for k in range(K):
            acc = acc + (xpad_ref[:, base + k:base + k + T_out]
                         * w_ref[:, k:k + 1])

    o_ref[0] = acc.astype(o_ref.dtype)


def _vmem_footprint_bytes(c_tile, T, T_out, K, padding, L, itemsize):
    """Rough per-grid-step VMEM footprint: double-buffered blocks + halo
    scratch + f32 accumulator + slack for compiler temporaries."""
    x_blk = 2 * c_tile * T * itemsize          # double-buffered input block
    o_blk = 2 * c_tile * T_out * itemsize      # double-buffered output block
    wb_blk = 2 * c_tile * (K + 1) * 4          # taps + bias blocks
    halo = c_tile * (L + T + padding) * itemsize if padding > 0 else 0
    acc = c_tile * T_out * 4                   # f32 accumulator value
    temps = 2 * c_tile * max(T, T_out) * 4     # slack for slice temporaries
    return x_blk + o_blk + wb_blk + halo + acc + temps


def _pick_c_tile(C, footprint, sub, budget):
    """Largest channel tile that divides C, respects sublane packing, and keeps
    the estimated per-step VMEM footprint within budget."""
    divisors = [c for c in range(sub, C + 1, sub) if C % c == 0]
    if not divisors:
        return C
    fitting = [c for c in divisors if footprint(c) <= budget]
    return max(fitting) if fitting else min(divisors)


def lightweight_conv1d(x, weight, bias=None, *, padding=0, heads=1,
                       weight_softmax=False,
                       block_budget_bytes=12 * 1024 * 1024):
    """Forward pass of LightweightConv1d.

    x:      (B, C, T) float array
    weight: (heads, 1, K)
    bias:   (C,) or None
    returns (B, C, T + 2*padding - K + 1)
    """
    B, C, T = x.shape
    H, _, K = weight.shape
    assert H == heads and C % H == 0
    assert T + 2 * padding >= K, "T + 2*padding must be >= kernel_size"

    w = weight
    if weight_softmax:
        w = jax.nn.softmax(w, axis=-1)          # tiny parameter prep

    # Channel c convolves with head (c % H)'s taps.
    w_c = jnp.tile(w[:, 0, :], (C // H, 1)).astype(jnp.float32)   # (C, K)
    b_c = (jnp.zeros((C, 1), jnp.float32) if bias is None
           else bias.reshape(C, 1).astype(jnp.float32))           # (C, 1)

    T_out = T + 2 * padding - K + 1
    itemsize = jnp.dtype(x.dtype).itemsize
    sub = {4: 8, 2: 16, 1: 32}.get(itemsize, 8)            # sublane packing
    L = ((padding + 127) // 128) * 128 if padding > 0 else 0

    footprint = functools.partial(_vmem_footprint_bytes, T=T, T_out=T_out,
                                  K=K, padding=padding, L=L, itemsize=itemsize)

    x_w, w_w, b_w, C_work = x, w_c, b_c, C
    if C % sub == 0:
        C_TILE = _pick_c_tile(C, footprint, sub, block_budget_bytes)
    elif footprint(C) <= block_budget_bytes:
        C_TILE = C                      # full-dim block is layout-legal
    else:
        # Guard: pad channels so a bounded, packing-aligned tile exists instead
        # of silently using one huge block that can blow VMEM.
        C_work = ((C + sub - 1) // sub) * sub
        x_w = jnp.pad(x, ((0, 0), (0, C_work - C), (0, 0)))
        w_w = jnp.pad(w_c, ((0, C_work - C), (0, 0)))
        b_w = jnp.pad(b_c, ((0, C_work - C), (0, 0)))
        C_TILE = _pick_c_tile(C_work, footprint, sub, block_budget_bytes)
    n_ct = C_work // C_TILE

    kernel = functools.partial(_lightconv_kernel, K=K, padding=padding,
                               L=L, T=T, T_out=T_out)

    scratch_shapes = ([pltpu.VMEM((C_TILE, L + T + padding), x.dtype)]
                      if padding > 0 else [])

    vmem_need = footprint(C_TILE)
    # Explicit limit: raise above v5e's 16 MiB scoped default, stay well under
    # v7x's 64 MiB physical VMEM.
    vmem_limit = int(min(64 * 1024 * 1024, max(32 * 1024 * 1024, 2 * vmem_need)))

    # Advisory cost hint (x read once, out written once; taps/bias fetched once
    # per channel tile since they stay resident along the inner batch axis).
    flops = 2 * B * C_work * T_out * K
    bytes_accessed = (B * C_work * T * itemsize
                      + B * C_work * T_out * itemsize
                      + C_work * K * 4 + C_work * 4)

    out = pl.pallas_call(
        kernel,
        out_shape=jax.ShapeDtypeStruct((B, C_work, T_out), x.dtype),
        grid_spec=pltpu.PrefetchScalarGridSpec(
            num_scalar_prefetch=0,
            grid=(n_ct, B),   # channel tiles outer, batch inner: weight/bias
            in_specs=[        # blocks are constant along the inner axis.
                pl.BlockSpec((1, C_TILE, T), lambda ci, b: (b, ci, 0)),
                pl.BlockSpec((C_TILE, K), lambda ci, b: (ci, 0)),
                pl.BlockSpec((C_TILE, 1), lambda ci, b: (ci, 0)),
            ],
            out_specs=pl.BlockSpec((1, C_TILE, T_out),
                                   lambda ci, b: (b, ci, 0)),
            scratch_shapes=scratch_shapes,
        ),
        compiler_params=pltpu.CompilerParams(
            dimension_semantics=("parallel", "parallel"),
            vmem_limit_bytes=vmem_limit),
        cost_estimate=pl.CostEstimate(flops=flops, transcendentals=0,
                                      bytes_accessed=bytes_accessed),
    )(x_w, w_w, b_w)

    if C_work != C:
        out = out[:, :C, :]
    return out


def _reference(x, weight, bias, padding, heads, weight_softmax):
    """Pure-JAX reference reproducing the PyTorch forward exactly."""
    B, C, T = x.shape
    w = jax.nn.softmax(weight, axis=-1) if weight_softmax else weight
    xr = x.reshape(B * C // heads, heads, T)
    ref = jax.lax.conv_general_dilated(
        xr, w, window_strides=(1,), padding=[(padding, padding)],
        feature_group_count=heads,
        dimension_numbers=("NCH", "OIH", "NCH"))
    ref = ref.reshape(B, C, -1)
    if bias is not None:
        ref = ref + bias.reshape(1, C, 1)
    return ref


if __name__ == "__main__":
    # Module hyper-parameters (small, consistent with the PyTorch module).
    B, C, T = 2, 16, 16
    heads, K = 4, 3

    key = jax.random.PRNGKey(0)
    kx, kw, kb = jax.random.split(key, 3)

    # Deterministic xavier_uniform_ init for weight of shape (heads, 1, K).
    fan_in, fan_out = K, heads * K
    bound = (6.0 / (fan_in + fan_out)) ** 0.5
    weight = jax.random.uniform(kw, (heads, 1, K), jnp.float32, -bound, bound)
    bias = 0.1 * jax.random.normal(kb, (C,), jnp.float32)  # exercises bias fold
    x = jax.random.normal(kx, (B, C, T), jnp.float32)

    ok = True

    # Case 1: 'same'-style conv — padding > 0, softmax weights, bias.
    out1 = jax.block_until_ready(
        lightweight_conv1d(x, weight, bias, padding=1, heads=heads,
                           weight_softmax=True))
    ref1 = _reference(x, weight, bias, 1, heads, True)
    ok &= out1.shape == ref1.shape
    ok &= bool(jnp.allclose(out1, ref1, atol=1e-5, rtol=1e-5))

    # Case 2: valid conv — padding == 0 (scratch-free path), no bias.
    out2 = jax.block_until_ready(
        lightweight_conv1d(x, weight, None, padding=0, heads=heads,
                           weight_softmax=False))
    ref2 = _reference(x, weight, None, 0, heads, False)
    ok &= out2.shape == ref2.shape
    ok &= bool(jnp.allclose(out2, ref2, atol=1e-5, rtol=1e-5))

    assert ok, (float(jnp.max(jnp.abs(out1 - ref1))),
                float(jnp.max(jnp.abs(out2 - ref2))))
    print("KERNEL_OK")
</pallas_src>

<mosaic_0001>
module attributes {stable_mosaic.version = 11 : i64} {
  func.func @_lightconv_kernel(%arg0: i32, %arg1: i32, %arg2: memref<1x16x16xf32, #tpu.memory_space<vmem>>, %arg3: memref<16x3xf32, #tpu.memory_space<vmem>>, %arg4: memref<16x1xf32, #tpu.memory_space<vmem>>, %arg5: memref<1x16x16xf32, #tpu.memory_space<vmem>>, %arg6: memref<16x145xf32, #tpu.memory_space<vmem>>) attributes {dimension_semantics = [#tpu.dimension_semantics<parallel>, #tpu.dimension_semantics<parallel>], iteration_bounds = array<i64: 1, 2>, scalar_prefetch = 0 : i64, scratch_operands = 1 : i64, tpu.core_type = #tpu.core_type<tc>, window_params = [{transform_indices = @transform_0, window_bounds = array<i64: 1, 16, 16>}, {transform_indices = @transform_1, window_bounds = array<i64: 16, 3>}, {transform_indices = @transform_2, window_bounds = array<i64: 16, 1>}, {transform_indices = @transform_3, window_bounds = array<i64: 1, 16, 16>}]} {
    %c0 = arith.constant 0 : index
    %c0_0 = arith.constant 0 : index
    %0 = vector.load %arg4[%c0, %c0_0] : memref<16x1xf32, #tpu.memory_space<vmem>>, vector<16x1xf32>
    %1 = vector.shape_cast %0 : vector<16x1xf32> to vector<16x1xf32>
    %2 = vector.broadcast %1 : vector<16x1xf32> to vector<16x16xf32>
    %c0_1 = arith.constant 0 : index
    %c0_2 = arith.constant 0 : index
    %c0_3 = arith.constant 0 : index
    %3 = vector.load %arg2[%c0_1, %c0_2, %c0_3] : memref<1x16x16xf32, #tpu.memory_space<vmem>>, vector<1x16x16xf32>
    %4 = vector.shape_cast %3 : vector<1x16x16xf32> to vector<16x16xf32>
    %c0_4 = arith.constant 0 : index
    %c128 = arith.constant 128 : index
    %5 = vector.load %arg6[%c0_4, %c128] : memref<16x145xf32, #tpu.memory_space<vmem>>, vector<16x16xf32>
    tpu.vector_store %arg6[%c0_4, %c128], %4 {strides = array<i32>} : memref<16x145xf32, #tpu.memory_space<vmem>>, vector<16x16xf32>,
    %cst = arith.constant 0.000000e+00 : f32
    %6 = vector.broadcast %cst : f32 to vector<16x128xf32>
    %c0_5 = arith.constant 0 : index
    %c0_6 = arith.constant 0 : index
    %7 = vector.load %arg6[%c0_5, %c0_6] : memref<16x145xf32, #tpu.memory_space<vmem>>, vector<16x128xf32>
    tpu.vector_store %arg6[%c0_5, %c0_6], %6 {strides = array<i32>} : memref<16x145xf32, #tpu.memory_space<vmem>>, vector<16x128xf32>,
    %cst_7 = arith.constant 0.000000e+00 : f32
    %8 = vector.broadcast %cst_7 : f32 to vector<16x1xf32>
    %c0_8 = arith.constant 0 : index
    %c144 = arith.constant 144 : index
    %9 = vector.load %arg6[%c0_8, %c144] : memref<16x145xf32, #tpu.memory_space<vmem>>, vector<16x1xf32>
    tpu.vector_store %arg6[%c0_8, %c144], %8 {strides = array<i32>} : memref<16x145xf32, #tpu.memory_space<vmem>>, vector<16x1xf32>,
    %c0_9 = arith.constant 0 : index
    %c127 = arith.constant 127 : index
    %10 = vector.load %arg6[%c0_9, %c127] : memref<16x145xf32, #tpu.memory_space<vmem>>, vector<16x16xf32>
    %c0_10 = arith.constant 0 : index
    %c0_11 = arith.constant 0 : index
    %11 = vector.load %arg3[%c0_10, %c0_11] : memref<16x3xf32, #tpu.memory_space<vmem>>, vector<16x1xf32>
    %12 = vector.broadcast %11 : vector<16x1xf32> to vector<16x16xf32>
    %13 = arith.mulf %10, %12 : vector<16x16xf32>
    %14 = arith.addf %2, %13 : vector<16x16xf32>
    %c0_12 = arith.constant 0 : index
    %c128_13 = arith.constant 128 : index
    %15 = vector.load %arg6[%c0_12, %c128_13] : memref<16x145xf32, #tpu.memory_space<vmem>>, vector<16x16xf32>
    %c0_14 = arith.constant 0 : index
    %c1 = arith.constant 1 : index
    %16 = vector.load %arg3[%c0_14, %c1] : memref<16x3xf32, #tpu.memory_space<vmem>>, vector<16x1xf32>
    %17 = vector.broadcast %16 : vector<16x1xf32> to vector<16x16xf32>
    %18 = arith.mulf %15, %17 : vector<16x16xf32>
    %19 = arith.addf %14, %18 : vector<16x16xf32>
    %c0_15 = arith.constant 0 : index
    %c129 = arith.constant 129 : index
    %20 = vector.load %arg6[%c0_15, %c129] : memref<16x145xf32, #tpu.memory_space<vmem>>, vector<16x16xf32>
    %c0_16 = arith.constant 0 : index
    %c2 = arith.constant 2 : index
    %21 = vector.load %arg3[%c0_16, %c2] : memref<16x3xf32, #tpu.memory_space<vmem>>, vector<16x1xf32>
    %22 = vector.broadcast %21 : vector<16x1xf32> to vector<16x16xf32>
    %23 = arith.mulf %20, %22 : vector<16x16xf32>
    %24 = arith.addf %19, %23 : vector<16x16xf32>
    %c0_17 = arith.constant 0 : index
    %c0_18 = arith.constant 0 : index
    %c0_19 = arith.constant 0 : index
    %25 = vector.load %arg5[%c0_17, %c0_18, %c0_19] : memref<1x16x16xf32, #tpu.memory_space<vmem>>, vector<1x16x16xf32>
    %26 = vector.shape_cast %25 : vector<1x16x16xf32> to vector<16x16xf32>
    %27 = vector.shape_cast %24 : vector<16x16xf32> to vector<1x16x16xf32>
    tpu.vector_store %arg5[%c0_17, %c0_18, %c0_19], %27 {strides = array<i32>} : memref<1x16x16xf32, #tpu.memory_space<vmem>>, vector<1x16x16xf32>,
    return
  }
  func.func @transform_0(%arg0: i32, %arg1: i32) -> (i32, i32, i32) {
    %c0_i32 = arith.constant 0 : i32
    %c0_i32_0 = arith.constant 0 : i32
    return %arg1, %arg0, %c0_i32 : i32, i32, i32
  }
  func.func @transform_1(%arg0: i32, %arg1: i32) -> (i32, i32) {
    %c0_i32 = arith.constant 0 : i32
    %c0_i32_0 = arith.constant 0 : i32
    return %arg0, %c0_i32 : i32, i32
  }
  func.func @transform_2(%arg0: i32, %arg1: i32) -> (i32, i32) {
    %c0_i32 = arith.constant 0 : i32
    %c0_i32_0 = arith.constant 0 : i32
    return %arg0, %c0_i32 : i32, i32
  }
  func.func @transform_3(%arg0: i32, %arg1: i32) -> (i32, i32, i32) {
    %c0_i32 = arith.constant 0 : i32
    %c0_i32_0 = arith.constant 0 : i32
    return %arg1, %arg0, %c0_i32 : i32, i32, i32
  }
}

</mosaic_0001>

<llo_original>
// kernel: tpu_custom_call.1
$region0: #{tpu_custom_call.1}
  #allocation0 [shape = 'u32[]', space=smem, size = 0x4, offset = 0x4, fixed_abs, tag = 'smem constant byte address 0x4 - core index']
  #allocation1 [shape = 'u32[144,128]{1,0:T(1,128)}', space=vmem, size = 0x12000, scoped, tag = 'internal scratch']
  #allocation2 [shape = 'f32[16,145]{1,0:T(8,128)}', space=vmem, size = 0x4000, scoped, tag = 'scratch operand']
  %s0 = inlined_call_operand.vmem [shape: f32[2,16,16], index: 0, kind: input, shape index: {}]
  %s1 = inlined_call_operand.vmem [shape: f32[16,3], index: 1, kind: input, shape index: {}]
  %s2 = inlined_call_operand.vmem [shape: f32[16,1], index: 2, kind: input, shape index: {}]
  %s3 = inlined_call_operand.hbm [shape: f32[2,16,16], index: 3, kind: output, shape index: {}]
  %s4 = sld [smem:[#allocation0]]
  $region45: #{tpu_custom_call.1} parent=0
    _
  %s6 = ssub.s32 1, %s4
  %s7 = scalar_select 0, %s6, %s4
  $region1: #{tpu_custom_call.1} parent=0
    #allocation3 [shape = 'u8[16384]{0}', space=vmem, size = 0x4000, scoped, tag = 'output window, operand 0']
    #allocation4 [shape = 's32[2]{0}', space=sflag, size = 0x8, scoped, tag = 'scoped memory for tpu_custom_call.1']
    %8 = vsyncpa [#allocation4], 0
    %s9 = scalar_lea.sflag [#allocation4], 1
    %10 = vsyncpa %s9, 0
    loop: start=0, step=1, limit=4
    $region2: #{tpu_custom_call.1} parent=1 // loop_pre_header
      _
    $region3: #{tpu_custom_call.1} parent=1 // loop_header
      %s12 = sphi 0, %s16
      %p13 = scmp.ge.s32.totalorder %s12, 4
      %s19 = sphi 0, %s31
      %s20 = sphi 0, %s27
      %s21 = sphi 0, %s19
      %s22 = sphi 0, %s20
      %s23 = sphi 0, %s21
      %s24 = sphi 0, %s22
      %s36 = sphi 0, %s38
      %s39 = sphi 0, %s36
      %s40 = sphi 0, %s39
      %s56 = sphi 0, %s40
      %s62 = sphi 0, %s64
      %s65 = sphi 0, %s62
      %s66 = sphi 0, %s65
      %s82 = sphi 0, %s66
      %s88 = sphi 0, %s90
      %s91 = sphi 0, %s88
      %s92 = sphi 0, %s91
      %s108 = sphi 0, %s92
      %s116 = sphi 0, %s118
      %s119 = sphi 0, %s116
      %s120 = sphi 0, %s119
      %s136 = sphi 0, %s120
    $region4: #{tpu_custom_call.1} parent=1 // loop_header_branch
      %15 = sbr.rel (%p13) target = $region8
    $region5: #{tpu_custom_call.1} parent=1 // loop_body
      %s17 = ssub.s32 %s12, 1
      %s18 = ssub.s32 %s12, 2
      %s25 = sadd.s32 1, %s20
      %p26 = scmp.ge.s32.totalorder %s25, 2
      %s27 = scalar_select %p26, 0, %s25
      %s28 = sadd.s32 1, %s19
      %s29 = scalar_select %p26, %s28, %s19
      %p30 = scmp.ge.s32.totalorder %s29, 1
      %s31 = scalar_select %p30, 0, %s29
      %s32 = ssub.s32 %s20, %s27
      %s33 = ssub.s32 %s19, %s31
      %s34 = sor.u32 %s32, %s33
      %p35 = scmp.eq.s32.totalorder %s34, 0
      %s37 = sadd.s32 %s36, 1
      %s38 = scalar_select %p35, %s36, %s37
      %p41 = pneg %p35
      %p42 = scmp.eq.s32.totalorder %s12, 1
      %p43 = por %p41, %p42
      %p44 = scmp.ne.s32.totalorder %s36, %s39
      %p45 = scmp.eq.s32.totalorder %s12, 0
      %p46 = por %p44, %p45
      %p47 = scmp.ne.s32.totalorder %s36, %s39
      %p48 = scmp.eq.s32.totalorder %s17, 1
      %p49 = por %p47, %p48
      %p50 = scmp.ne.s32.totalorder %s39, %s40
      %p51 = scmp.eq.s32.totalorder %s17, 0
      %p52 = por %p50, %p51
      %p53 = scmp.ne.s32.totalorder %s39, %s40
      %p54 = scmp.eq.s32.totalorder %s18, 1
      %p55 = por %p53, %p54
      %p57 = scmp.ne.s32.totalorder %s40, %s56
      %p58 = scmp.eq.s32.totalorder %s18, 0
      %p59 = por %p57, %p58
      %s60 = ssub.s32 %s19, %s31
      %p61 = scmp.eq.s32.totalorder %s60, 0
      %s63 = sadd.s32 %s62, 1
      %s64 = scalar_select %p61, %s62, %s63
      %p67 = pneg %p61
      %p68 = scmp.eq.s32.totalorder %s12, 1
      %p69 = por %p67, %p68
      %p70 = scmp.ne.s32.totalorder %s62, %s65
      %p71 = scmp.eq.s32.totalorder %s12, 0
      %p72 = por %p70, %p71
      %p73 = scmp.ne.s32.totalorder %s62, %s65
      %p74 = scmp.eq.s32.totalorder %s17, 1
      %p75 = por %p73, %p74
      %p76 = scmp.ne.s32.totalorder %s65, %s66
      %p77 = scmp.eq.s32.totalorder %s17, 0
      %p78 = por %p76, %p77
      %p79 = scmp.ne.s32.totalorder %s65, %s66
      %p80 = scmp.eq.s32.totalorder %s18, 1
      %p81 = por %p79, %p80
      %p83 = scmp.ne.s32.totalorder %s66, %s82
      %p84 = scmp.eq.s32.totalorder %s18, 0
      %p85 = por %p83, %p84
      %s86 = ssub.s32 %s19, %s31
      %p87 = scmp.eq.s32.totalorder %s86, 0
      %s89 = sadd.s32 %s88, 1
      %s90 = scalar_select %p87, %s88, %s89
      %p93 = pneg %p87
      %p94 = scmp.eq.s32.totalorder %s12, 1
      %p95 = por %p93, %p94
      %p96 = scmp.ne.s32.totalorder %s88, %s91
      %p97 = scmp.eq.s32.totalorder %s12, 0
      %p98 = por %p96, %p97
      %p99 = scmp.ne.s32.totalorder %s88, %s91
      %p100 = scmp.eq.s32.totalorder %s17, 1
      %p101 = por %p99, %p100
      %p102 = scmp.ne.s32.totalorder %s91, %s92
      %p103 = scmp.eq.s32.totalorder %s17, 0
      %p104 = por %p102, %p103
      %p105 = scmp.ne.s32.totalorder %s91, %s92
      %p106 = scmp.eq.s32.totalorder %s18, 1
      %p107 = por %p105, %p106
      %p109 = scmp.ne.s32.totalorder %s92, %s108
      %p110 = scmp.eq.s32.totalorder %s18, 0
      %p111 = por %p109, %p110
      %s112 = ssub.s32 %s20, %s27
      %s113 = ssub.s32 %s19, %s31
      %s114 = sor.u32 %s112, %s113
      %p115 = scmp.eq.s32.totalorder %s114, 0
      %s117 = sadd.s32 %s116, 1
      %s118 = scalar_select %p115, %s116, %s117
      %p121 = pneg %p115
      %p122 = scmp.eq.s32.totalorder %s12, 1
      %p123 = por %p121, %p122
      %p124 = scmp.ne.s32.totalorder %s116, %s119
      %p125 = scmp.eq.s32.totalorder %s12, 0
      %p126 = por %p124, %p125
      %p127 = scmp.ne.s32.totalorder %s116, %s119
      %p128 = scmp.eq.s32.totalorder %s17, 1
      %p129 = por %p127, %p128
      %p130 = scmp.ne.s32.totalorder %s119, %s120
      %p131 = scmp.eq.s32.totalorder %s17, 0
      %p132 = por %p130, %p131
      %p133 = scmp.ne.s32.totalorder %s119, %s120
      %p134 = scmp.eq.s32.totalorder %s18, 1
      %p135 = por %p133, %p134
      %p137 = scmp.ne.s32.totalorder %s120, %s136
      %p138 = scmp.eq.s32.totalorder %s18, 0
      %p139 = por %p137, %p138
      %p140 = scmp.le.s32.totalorder 1, %s12
      %p141 = scmp.lt.s32.totalorder %s12, 3
      %p142 = pnand %p140, %p141
      %p143 = pneg %p142
      // Predicated region
      $region9: #{tpu_custom_call.1} parent=5 // pred_check
        _
      $region10: #{tpu_custom_call.1} parent=5 // pred_check_branch
        %145 = sbr.rel (%p142) target = $region12
      $region11: #{tpu_custom_call.1} parent=5 // pred_region
        %s146 = ssub.s32 %s12, 1
        // Predicated region
        $region13: #{tpu_custom_call.1} parent=11 // pred_check
          %p147 = pneg %p78
        $region14: #{tpu_custom_call.1} parent=11 // pred_check_branch
          %149 = sbr.rel (%p147) target = $region16
        $region15: #{tpu_custom_call.1} parent=11 // pred_region
          %s150 = smul.u32 2, %s21
          %p151 = scmp.lt.s32.totalorder %s150, 1
          %s152 = scalar_select %p151, %s150, 1
          %s153 = smul.addr %s152, 8
          %s154 = scalar_lea.vmem %s1, %s153
          %s155 = smul.u32 2, %s21
        $region16: #{tpu_custom_call.1} parent=11 // pred_fallthru
          _
        // Predicated region
        $region17: #{tpu_custom_call.1} parent=11 // pred_check
          %p156 = pneg %p104
        $region18: #{tpu_custom_call.1} parent=11 // pred_check_branch
          %158 = sbr.rel (%p156) target = $region20
        $region19: #{tpu_custom_call.1} parent=11 // pred_region
          %s159 = smul.u32 2, %s21
          %p160 = scmp.lt.s32.totalorder %s159, 1
          %s161 = scalar_select %p160, %s159, 1
          %s162 = smul.addr %s161, 8
          %s163 = scalar_lea.vmem %s2, %s162
          %s164 = smul.u32 2, %s21
        $region20: #{tpu_custom_call.1} parent=11 // pred_fallthru
          _
      $region12: #{tpu_custom_call.1} parent=5 // pred_fallthru
        _
      %p165 = scmp.lt.s32.totalorder %s12, 2
      // Predicated region
      $region21: #{tpu_custom_call.1} parent=5 // pred_check
        %p166 = pneg %p165
      $region22: #{tpu_custom_call.1} parent=5 // pred_check_branch
        %168 = sbr.rel (%p166) target = $region24
      $region23: #{tpu_custom_call.1} parent=5 // pred_region
        // Predicated region
        $region25: #{tpu_custom_call.1} parent=23 // pred_check
          %p169 = pneg %p46
        $region26: #{tpu_custom_call.1} parent=23 // pred_check_branch
          %171 = sbr.rel (%p169) target = $region28
        $region27: #{tpu_custom_call.1} parent=23 // pred_region
          %s172 = smul.u32 2, %s19
          %p173 = scmp.lt.s32.totalorder %s20, 1
          %s174 = scalar_select %p173, %s20, 1
          %p175 = scmp.lt.s32.totalorder %s172, 1
          %s176 = scalar_select %p175, %s172, 1
          %s177 = smul.addr %s174, 2
          %s178 = sadd.s32 %s176, %s177
          %s179 = smul.addr %s178, 8
          %s180 = scalar_lea.vmem %s0, %s179
          %s181 = smul.u32 2, %s19
        $region28: #{tpu_custom_call.1} parent=23 // pred_fallthru
          _
      $region24: #{tpu_custom_call.1} parent=5 // pred_fallthru
        _
      %p182 = scmp.le.s32.totalorder 1, %s12
      %p183 = scmp.lt.s32.totalorder %s12, 3
      %p184 = pnand %p182, %p183
      %p185 = pneg %p184
      // Predicated region
      $region29: #{tpu_custom_call.1} parent=5 // pred_check
        _
      $region30: #{tpu_custom_call.1} parent=5 // pred_check_branch
        %187 = sbr.rel (%p184) target = $region32
      $region31: #{tpu_custom_call.1} parent=5 // pred_region
        %s188 = ssub.s32 %s12, 1
        %s189 = smul.u32 2, %s21
        %p190 = scmp.lt.s32.totalorder %s22, 1
        %s191 = scalar_select %p190, %s22, 1
        %p192 = scmp.lt.s32.totalorder %s189, 1
        %s193 = scalar_select %p192, %s189, 1
        %s194 = smul.addr %s191, 2
        %s195 = sadd.s32 %s193, %s194
        %s196 = smul.addr %s195, 8
        %s197 = scalar_lea.vmem %s0, %s196
        %p198 = pneg %p52
        %p199 = pneg %p49
        %s200 = smul.u32 2, %s21
        %p201 = scmp.lt.s32.totalorder %s200, 1
        %s202 = scalar_select %p201, %s200, 1
        %s203 = smul.addr %s202, 8
        %s204 = scalar_lea.vmem %s1, %s203
        %p205 = pneg %p78
        %p206 = pneg %p75
        %s207 = smul.u32 2, %s21
        %p208 = scmp.lt.s32.totalorder %s207, 1
        %s209 = scalar_select %p208, %s207, 1
        %s210 = smul.addr %s209, 8
        %s211 = scalar_lea.vmem %s2, %s210
        %p212 = pneg %p104
        %p213 = pneg %p101
        %p214 = pneg %p132
        %p215 = pneg %p129
        %s216 = sand.u32 %s119, 1
        %s217 = scalar_lea.sflag [#allocation4], %s216
        %s218 = sand.u32 %s119, 1
        %s219 = smul.addr %s218, 16
        %s220 = scalar_lea.vmem [#allocation3], %s219
        %s221 = smul.u32 2, %s21
        %p222 = scmp.lt.s32.totalorder %s22, 1
        %s223 = scalar_select %p222, %s22, 1
        %p224 = scmp.lt.s32.totalorder %s221, 1
        %s225 = scalar_select %p224, %s221, 1
        %s226 = smul.addr %s223, 2
        %s227 = sadd.s32 %s225, %s226
        %s228 = smul.addr %s227, 8
        %s229 = scalar_lea.vmem %s0, %s228
        %s230 = smul.u32 2, %s21
        %s231 = smul.u32 2, %s21
        %p232 = scmp.lt.s32.totalorder %s231, 1
        %s233 = scalar_select %p232, %s231, 1
        %s234 = smul.addr %s233, 8
        %s235 = scalar_lea.vmem %s1, %s234
        %s236 = smul.u32 2, %s21
        %s237 = smul.u32 2, %s21
        %p238 = scmp.lt.s32.totalorder %s237, 1
        %s239 = scalar_select %p238, %s237, 1
        %s240 = smul.addr %s239, 8
        %s241 = scalar_lea.vmem %s2, %s240
        %s242 = smul.u32 2, %s21
        %s243 = smul.u32 2, %s21
        %v244 = vld [vmem:[%s241] sm:$0xff]
        %v245 = vld [vmem:[%s241 + $0x8] sm:$0xff]
        %247 = vset.pattern.permute.xlu0 0
        %248 = vperm.xlu0 %247, %v244
        %v249 = vpop.permute.xlu0 %248
        %252 = vset.pattern.permute.xlu0 0
        %253 = vperm.xlu0 %252, %v245
        %v254 = vpop.permute.xlu0 %253
        %v256 = vld [vmem:[%s229] sm:$0xff]
        %v257 = vld [vmem:[%s229 + $0x8] sm:$0xff]
        %vm258 = vcmask 130048
        %259 = vst.msk [vmem:[#allocation2 + $0x8] sm:$0xff] %vm258, %v256
        %260 = vst.msk [vmem:[#allocation2 + $0x18] sm:$0xff] %vm258, %v257
        %261 = vst [vmem:[#allocation2] sm:$0xff] 0.0
        %262 = vst [vmem:[#allocation2 + $0x10] sm:$0xff] 0.0
        %vm263 = vcmask 138368
        %264 = vst.msk [vmem:[#allocation2 + $0x8] sm:$0xff] %vm263, 0.0
        %265 = vst.msk [vmem:[#allocation2 + $0x18] sm:$0xff] %vm263, 0.0
        %v266 = vld [vmem:[#allocation2] sm:$0xff]
        %v267 = vld [vmem:[#allocation2 + $0x8] sm:$0xff]
        %v268 = vld [vmem:[#allocation2 + $0x10] sm:$0xff]
        %v269 = vld [vmem:[#allocation2 + $0x18] sm:$0xff]
        %v270 = vld [vmem:[%s235] sm:$0xff]
        %v271 = vld [vmem:[%s235 + $0x8] sm:$0xff]
        %273 = vset.pattern.permute.xlu0 0
        %274 = vperm.xlu0 %273, %v270
        %v275 = vpop.permute.xlu0 %274
        %278 = vset.pattern.permute.xlu0 0
        %279 = vperm.xlu0 %278, %v271
        %v280 = vpop.permute.xlu0 %279
        %v282 = vmul.f32 %v266, %v275
        %v283 = vmul.f32 %v267, %v275
        %v284 = vmul.f32 %v268, %v280
        %v285 = vmul.f32 %v269, %v280
        %v286 = vadd.f32 %v249, %v282
        %v287 = vadd.f32 %v249, %v283
        %v288 = vadd.f32 %v254, %v284
        %v289 = vadd.f32 %v254, %v285
        %290 = vset.pattern.permute.xlu0 1
        %291 = vperm.xlu0 %290, %v270
        %v292 = vpop.permute.xlu0 %291
        %294 = vset.pattern.permute.xlu0 1
        %295 = vperm.xlu0 %294, %v271
        %v296 = vpop.permute.xlu0 %295
        %v298 = vmul.f32 %v267, %v292
        %v299 = vmul.f32 %v269, %v296
        %302 = vrot.lane.b32.xlu0 %v298, 127
        %v303 = vpop.permute.xlu0 %302
        %304 = vrot.lane.b32.xlu0 %v299, 127
        %v305 = vpop.permute.xlu0 %304
        %v308 = vadd.f32 %v286, %v303
        %v309 = vadd.f32 %v287, %v303
        %v310 = vadd.f32 %v288, %v305
        %v311 = vadd.f32 %v289, %v305
        %312 = vset.pattern.permute.xlu0 2
        %313 = vperm.xlu0 %312, %v270
        %v314 = vpop.permute.xlu0 %313
        %316 = vset.pattern.permute.xlu0 2
        %317 = vperm.xlu0 %316, %v271
        %v318 = vpop.permute.xlu0 %317
        %v320 = vmul.f32 %v267, %v314
        %v321 = vmul.f32 %v269, %v318
        %324 = vrot.lane.b32.xlu0 %v320, 126
        %v325 = vpop.permute.xlu0 %324
        %326 = vrot.lane.b32.xlu0 %v321, 126
        %v327 = vpop.permute.xlu0 %326
        %v330 = vadd.f32 %v308, %v325
        %v331 = vadd.f32 %v309, %v325
        %v332 = vadd.f32 %v310, %v327
        %v333 = vadd.f32 %v311, %v327
        %338 = vrot.lane.b32.xlu0 %v330, 1
        %v339 = vpop.permute.xlu0 %338
        %340 = vrot.lane.b32.xlu0 %v331, 1
        %v341 = vpop.permute.xlu0 %340
        %342 = vrot.lane.b32.xlu0 %v332, 1
        %v343 = vpop.permute.xlu0 %342
        %344 = vrot.lane.b32.xlu0 %v333, 1
        %v345 = vpop.permute.xlu0 %344
        %vm346 = vcmask 7168
        %v347 = vsel %vm346, %v339, %v341
        %v348 = vsel %vm346, %v343, %v345
        %351 = vst.msk [vmem:[%s220] sm:$0xff] %vm258, %v347
        %352 = vst.msk [vmem:[%s220 + $0x8] sm:$0xff] %vm258, %v348
        %s353 = sand.u32 %s119, 1
        %s354 = scalar_lea.sflag [#allocation4], %s353
        %s355 = sand.u32 %s119, 1
        %s356 = smul.addr %s355, 16
        %s357 = scalar_lea.vmem [#allocation3], %s356
        // Predicated region
        $region33: #{tpu_custom_call.1} parent=31 // pred_check
          %p358 = pneg %p129
        $region34: #{tpu_custom_call.1} parent=31 // pred_check_branch
          %360 = sbr.rel (%p358) target = $region36
        $region35: #{tpu_custom_call.1} parent=31 // pred_region
          %s361 = smul.u32 2, %s21
          %s363 = ssub.s32 256, 256
          %364 = vsyncadd %s354, %s363
          %s365 = smul.addr %s22, 2
          %s366 = sadd.s32 %s361, %s365
          %s367 = smul.addr %s366, 128
          %s368 = scalar_lea.hbm %s3, %s367
          %s369 = sshll.u32 %s357, 4
          %s370 = int_to_ptr.vmem [resolvable:$true] %s369
          %375 = dma.vmem_to_hbm [thread:$0]  %s370, 256, %s368, %s354, 128, 128, 8
        $region36: #{tpu_custom_call.1} parent=31 // pred_fallthru
          _
      $region32: #{tpu_custom_call.1} parent=5 // pred_fallthru
        _
      %p376 = scmp.le.s32.totalorder 2, %s12
      // Predicated region
      $region37: #{tpu_custom_call.1} parent=5 // pred_check
        %p377 = pneg %p376
      $region38: #{tpu_custom_call.1} parent=5 // pred_check_branch
        %379 = sbr.rel (%p377) target = $region40
      $region39: #{tpu_custom_call.1} parent=5 // pred_region
        %s380 = ssub.s32 %s12, 2
        // Predicated region
        $region41: #{tpu_custom_call.1} parent=39 // pred_check
          %p381 = pneg %p135
        $region42: #{tpu_custom_call.1} parent=39 // pred_check_branch
          %383 = sbr.rel (%p381) target = $region44
        $region43: #{tpu_custom_call.1} parent=39 // pred_region
          %s384 = sand.u32 %s120, 1
          %s385 = scalar_lea.sflag [#allocation4], %s384
          %s386 = sand.u32 %s120, 1
          %s387 = smul.addr %s386, 16
          %s388 = scalar_lea.vmem [#allocation3], %s387
          %389 = dma.done %s385, 256
        $region44: #{tpu_custom_call.1} parent=39 // pred_fallthru
          _
      $region40: #{tpu_custom_call.1} parent=5 // pred_fallthru
        _
    $region6: #{tpu_custom_call.1} parent=1 // loop_footer
      %s16 = sadd.s32 1, %s12
    $region7: #{tpu_custom_call.1} parent=1 // loop_footer_branch
      %11 = sbr.rel target = $region3
    $region8: #{tpu_custom_call.1} parent=1 // loop_exit
      _
    %390 = vsyncpa [#allocation4], 1
    %s391 = scalar_lea.sflag [#allocation4], 1
    %392 = vsyncpa %s391, 1

</llo_original>
